<compile_context>
chip_gen: v5e
topology: v5e:2x2
jax: 0.10.0
libtpu: 0.0.40
codegen_flags: <defaults>
</compile_context>

<pallas_src>
import functools
import math

import jax
import jax.numpy as jnp
from jax.experimental import pallas as pl
from jax.experimental.pallas import tpu as pltpu


def _round_up(x: int, m: int) -> int:
    return (x + m - 1) // m * m


def _pick_tile(n_pad: int, desired: int, *, min_grid: int = 1) -> int:
    """Largest multiple of 128 that divides n_pad, <= desired, leaving >= min_grid blocks."""
    blocks = n_pad // 128
    desired_blocks = max(1, desired // 128)
    if min_grid > 1:
        desired_blocks = min(desired_blocks, max(1, blocks // min_grid))
    for d in range(min(desired_blocks, blocks), 0, -1):
        if blocks % d == 0:
            return d * 128
    return 128


# --------------------------------------------------------------------------- #
# Kernel 1: symmetrize  A = M + M^T   (upper-triangular block pairs, reads M once)
# --------------------------------------------------------------------------- #
def _sym_adj_kernel(bi_ref, bj_ref, m_ij_ref, m_ji_ref, a_ref):
    del bi_ref, bj_ref          # only used by the index maps
    s = pl.program_id(1)

    @pl.when(s == 0)            # write A[i, j] = M[i, j] + M[j, i]^T
    def _():
        a_ref[...] = (m_ij_ref[...] + m_ji_ref[...].T).astype(a_ref.dtype)

    @pl.when(s == 1)            # write A[j, i] = M[j, i] + M[i, j]^T
    def _():
        a_ref[...] = (m_ji_ref[...] + m_ij_ref[...].T).astype(a_ref.dtype)


def _symmetrize_adjacency(m, tile, out_dtype):
    n_pad = m.shape[0]
    g = n_pad // tile
    # Upper-triangular block pairs i <= j.  One pair loads M[i,j] and M[j,i]
    # once and emits both A blocks -> read stream ~halved vs a (g, g) grid.
    bi = jnp.asarray([i for i in range(g) for j in range(i, g)], jnp.int32)
    bj = jnp.asarray([j for i in range(g) for j in range(i, g)], jnp.int32)
    n_pairs = int(bi.shape[0])
    itemsize = jnp.dtype(out_dtype).itemsize

    return pl.pallas_call(
        _sym_adj_kernel,
        out_shape=jax.ShapeDtypeStruct((n_pad, n_pad), out_dtype),
        grid_spec=pltpu.PrefetchScalarGridSpec(
            num_scalar_prefetch=2,
            grid=(n_pairs, 2),
            in_specs=[
                # Block indices do NOT depend on s -> fetched once per pair.
                pl.BlockSpec((tile, tile), lambda t, s, bi, bj: (bi[t], bj[t])),
                pl.BlockSpec((tile, tile), lambda t, s, bi, bj: (bj[t], bi[t])),
            ],
            out_specs=pl.BlockSpec(
                (tile, tile),
                lambda t, s, bi, bj: (jnp.where(s == 0, bi[t], bj[t]),
                                      jnp.where(s == 0, bj[t], bi[t]))),
        ),
        compiler_params=pltpu.CompilerParams(
            dimension_semantics=("parallel", "arbitrary")),
        cost_estimate=pl.CostEstimate(
            flops=int(2 * n_pad * n_pad),
            transcendentals=0,
            bytes_accessed=int(4 * n_pairs * tile * tile * itemsize)),
    )(bi, bj, m, m)


# --------------------------------------------------------------------------- #
# Kernel 2: first-layer GCN support  S = X @ W
# --------------------------------------------------------------------------- #
def _support_kernel(x_ref, w_ref, s_ref, *, mm_dtype):
    s_ref[...] = jnp.dot(x_ref[...].astype(mm_dtype), w_ref[...].astype(mm_dtype),
                         preferred_element_type=jnp.float32).astype(s_ref.dtype)


def _compute_support(feat, w, tile_m, out_dtype):
    n_pad, d_in = feat.shape
    d_out = w.shape[1]
    g = n_pad // tile_m
    return pl.pallas_call(
        functools.partial(_support_kernel, mm_dtype=out_dtype),
        out_shape=jax.ShapeDtypeStruct((n_pad, d_out), out_dtype),
        grid_spec=pltpu.PrefetchScalarGridSpec(
            num_scalar_prefetch=0,
            grid=(g,),
            in_specs=[
                pl.BlockSpec((tile_m, d_in), lambda i: (i, 0)),
                pl.BlockSpec((d_in, d_out), lambda i: (0, 0)),   # VMEM-resident weight
            ],
            out_specs=pl.BlockSpec((tile_m, d_out), lambda i: (i, 0)),
        ),
        compiler_params=pltpu.CompilerParams(dimension_semantics=("parallel",)),
        cost_estimate=pl.CostEstimate(
            flops=int(2 * n_pad * d_in * d_out),
            transcendentals=0,
            bytes_accessed=int(feat.size * feat.dtype.itemsize
                               + w.size * w.dtype.itemsize
                               + n_pad * d_out * jnp.dtype(out_dtype).itemsize)),
    )(feat, w)


# --------------------------------------------------------------------------- #
# Kernel 3: GCN aggregation  G = A @ S + b
#   epilogue fuses: running layer-sum (+prev), final mean (*scale),
#   and the next layer's support S_next = G @ W_next (second output).
# --------------------------------------------------------------------------- #
def _aggregate_kernel(a_ref, s_ref, b_ref, *rest, tile_k, resident_s,
                      has_prev, has_wnext, scale, mm_dtype):
    idx = 0
    prev_ref = None
    wn_ref = None
    if has_prev:
        prev_ref = rest[idx]; idx += 1
    if has_wnext:
        wn_ref = rest[idx]; idx += 1
    out_ref = rest[idx]; idx += 1
    snext_ref = None
    if has_wnext:
        snext_ref = rest[idx]; idx += 1
    acc_ref = rest[idx]

    k = pl.program_id(1)

    @pl.when(k == 0)
    def _():
        acc_ref[...] = jnp.zeros_like(acc_ref)

    if resident_s:
        off = pl.multiple_of(k * tile_k, tile_k)
        s_blk = s_ref[pl.ds(off, tile_k), :]
    else:
        s_blk = s_ref[...]

    acc_ref[...] += jnp.dot(a_ref[...].astype(mm_dtype), s_blk.astype(mm_dtype),
                            preferred_element_type=jnp.float32)

    @pl.when(k == pl.num_programs(1) - 1)
    def _():
        g = acc_ref[...] + b_ref[...].astype(jnp.float32)
        total = prev_ref[...].astype(jnp.float32) + g if has_prev else g
        if scale is not None:
            total = scale * total
        out_ref[...] = total.astype(out_ref.dtype)
        if has_wnext:
            snext_ref[...] = jnp.dot(
                g.astype(mm_dtype), wn_ref[...].astype(mm_dtype),
                preferred_element_type=jnp.float32).astype(snext_ref.dtype)


def _aggregate(adj, support, bias2d, prev, w_next, scale, tile_m, tile_k, compute_dtype):
    n_pad = adj.shape[0]
    d_out = support.shape[1]
    gm, gk = n_pad // tile_m, n_pad // tile_k

    # Keep the whole support VMEM-resident when it (double-buffered) fits well
    # under the 16 MiB v5e default scoped VMEM -> S is DMA'd once, not gm times.
    s_bytes = support.size * support.dtype.itemsize
    resident_s = 2 * s_bytes <= (8 << 20)

    in_specs = [pl.BlockSpec((tile_m, tile_k), lambda i, k: (i, k))]
    if resident_s:
        in_specs.append(pl.BlockSpec((n_pad, d_out), lambda i, k: (0, 0)))
    else:
        in_specs.append(pl.BlockSpec((tile_k, d_out), lambda i, k: (k, 0)))
    in_specs.append(pl.BlockSpec((1, d_out), lambda i, k: (0, 0)))          # bias
    args = [adj, support, bias2d]

    has_prev = prev is not None
    if has_prev:
        in_specs.append(pl.BlockSpec((tile_m, d_out), lambda i, k: (i, 0)))
        args.append(prev)
    has_wnext = w_next is not None
    if has_wnext:
        d_next = w_next.shape[1]
        in_specs.append(pl.BlockSpec((w_next.shape[0], d_next), lambda i, k: (0, 0)))
        args.append(w_next)

    out_shapes = [jax.ShapeDtypeStruct((n_pad, d_out), jnp.float32)]
    out_specs = [pl.BlockSpec((tile_m, d_out), lambda i, k: (i, 0))]
    if has_wnext:
        out_shapes.append(jax.ShapeDtypeStruct((n_pad, d_next), compute_dtype))
        out_specs.append(pl.BlockSpec((tile_m, d_next), lambda i, k: (i, 0)))

    kernel = functools.partial(
        _aggregate_kernel, tile_k=tile_k, resident_s=resident_s,
        has_prev=has_prev, has_wnext=has_wnext, scale=scale, mm_dtype=compute_dtype)

    flops = 2 * n_pad * n_pad * d_out
    bytes_accessed = (adj.size * adj.dtype.itemsize
                      + (1 if resident_s else gm) * s_bytes
                      + n_pad * d_out * 4)
    if has_prev:
        bytes_accessed += prev.size * prev.dtype.itemsize
    if has_wnext:
        flops += 2 * n_pad * d_out * w_next.shape[1]
        bytes_accessed += n_pad * w_next.shape[1] * jnp.dtype(compute_dtype).itemsize

    single = not has_wnext
    out_shape = out_shapes[0] if single else tuple(out_shapes)
    out_spec = out_specs[0] if single else out_specs

    outs = pl.pallas_call(
        kernel,
        out_shape=out_shape,
        grid_spec=pltpu.PrefetchScalarGridSpec(
            num_scalar_prefetch=0,
            grid=(gm, gk),                                   # reduction axis last
            in_specs=in_specs,
            out_specs=out_spec,
            scratch_shapes=[pltpu.VMEM((tile_m, d_out), jnp.float32)],
        ),
        compiler_params=pltpu.CompilerParams(
            dimension_semantics=("parallel", "arbitrary")),
        cost_estimate=pl.CostEstimate(flops=int(flops), transcendentals=0,
                                      bytes_accessed=int(bytes_accessed)),
    )(*args)
    if single:
        return outs, None
    return outs[0], outs[1]


# --------------------------------------------------------------------------- #
# Top-level forward
# --------------------------------------------------------------------------- #
def mhgcn_forward(x_feature, all_adj_matrix, relation_weight, gc_weights, gc_biases,
                  *, compute_dtype=jnp.bfloat16, tile=512):
    """MHGCN forward.

    x_feature:       [N, in_feature]
    all_adj_matrix:  [N, N, n_relation]
    relation_weight: [n_relation, 1]
    gc_weights[l]:   [d_in_l, out_feature]
    gc_biases[l]:    [out_feature]
    Returns [N, out_feature] float32 = mean over GC layer outputs.
    """
    n = x_feature.shape[0]
    n_layers = len(gc_weights)
    cdtype = jnp.dtype(compute_dtype)

    n_pad = _round_up(n, 128)
    pad = n_pad - n

    # Relation contraction M = sum_r w_r * adj[:, :, r]: a trivial XLA fusion over
    # the size-R minor axis, emitted directly in compute_dtype (no fp32 relayout).
    rel_w = jnp.reshape(relation_weight, (-1,)).astype(jnp.float32)
    m = jnp.einsum("ijr,r->ij", all_adj_matrix, rel_w,
                   precision=jax.lax.Precision.HIGHEST,
                   preferred_element_type=jnp.float32).astype(cdtype)

    x_pad = x_feature.astype(jnp.float32)
    if pad:
        # Zero padding is exact (also in bf16): padded A rows/cols are zero, so
        # padded output rows only ever hold bias terms and are sliced off.
        m = jnp.pad(m, ((0, pad), (0, pad)))
        x_pad = jnp.pad(x_pad, ((0, pad), (0, 0)))

    tile_a = _pick_tile(n_pad, tile)                  # adjacency / k-reduction tile
    tile_m = _pick_tile(n_pad, tile, min_grid=2)      # row tile: >= 2 row blocks for 2 TCs

    adj = _symmetrize_adjacency(m, tile_a, cdtype)

    # Layer-1 support; later supports are produced by the aggregate epilogues.
    support = _compute_support(x_pad, gc_weights[0].astype(jnp.float32), tile_m, cdtype)

    running_sum = None
    result = None
    for layer in range(n_layers):
        is_last = layer == n_layers - 1
        bias2d = jnp.reshape(gc_biases[layer], (1, -1)).astype(jnp.float32)
        w_next = None if is_last else gc_weights[layer + 1].astype(jnp.float32)
        scale = (1.0 / n_layers if n_layers > 1 else None) if is_last else None
        out, next_support = _aggregate(
            adj, support, bias2d, running_sum, w_next, scale,
            tile_m, tile_a, cdtype)
        if is_last:
            result = out
        else:
            running_sum = out          # running sum of layer outputs (fp32)
            support = next_support     # fused S_{l+1} = G_l @ W_{l+1}

    # TODO(synk): nn.Dropout(p=dropout) is constructed but never applied in the
    # reference forward(), so no dropout / RNG is implemented here.
    return result[:n]


# --------------------------------------------------------------------------- #
# Pure-JAX reference (mirrors the PyTorch module)
# --------------------------------------------------------------------------- #
def mhgcn_reference(x_feature, all_adj_matrix, relation_weight, gc_weights, gc_biases):
    hp = jax.lax.Precision.HIGHEST
    mh = jnp.squeeze(jnp.matmul(all_adj_matrix, relation_weight, precision=hp), axis=2)
    mh = mh + mh.T
    outs = []
    h = x_feature
    for w, b in zip(gc_weights, gc_biases):
        support = jnp.matmul(h, w, precision=hp)
        h = jnp.matmul(mh, support, precision=hp) + b
        outs.append(h)
    return jnp.mean(jnp.stack(outs, axis=0), axis=0)


if __name__ == "__main__":
    key = jax.random.PRNGKey(0)
    k_x, k_adj, k_rel, k_w1, k_b1, k_w2, k_b2 = jax.random.split(key, 7)

    # Small but tile-exercising shapes: multiple row blocks for the aggregate.
    N, D_IN, D_OUT, N_REL = 256, 64, 128, 2

    x = jax.random.normal(k_x, (N, D_IN), jnp.float32)
    all_adj = jax.random.uniform(k_adj, (N, N, N_REL), jnp.float32)
    rel_w = jax.random.uniform(k_rel, (N_REL, 1), jnp.float32, minval=0.0, maxval=0.1)

    def gc_init(kw, kb, d_in, d_out):
        std_v = 1.0 / math.sqrt(d_out)            # GraphConvolution.reset_parameters
        w = jax.random.uniform(kw, (d_in, d_out), jnp.float32, minval=-std_v, maxval=std_v)
        b = jax.random.uniform(kb, (d_out,), jnp.float32, minval=-std_v, maxval=std_v)
        return w, b

    w1, b1 = gc_init(k_w1, k_b1, D_IN, D_OUT)
    w2, b2 = gc_init(k_w2, k_b2, D_OUT, D_OUT)
    weights, biases = [w1, w2], [b1, b2]

    ref = mhgcn_reference(x, all_adj, rel_w, weights, biases)

    # float32 pass: tight correctness check against the pure-JAX reference.
    out_f32 = mhgcn_forward(x, all_adj, rel_w, weights, biases,
                            compute_dtype=jnp.float32, tile=512)
    out_f32 = jax.block_until_ready(out_f32)
    assert out_f32.shape == (N, D_OUT)
    assert bool(jnp.all(jnp.isfinite(out_f32)))
    assert jnp.allclose(out_f32, ref, atol=5e-3, rtol=5e-3), "f32 mismatch vs reference"

    # bf16 pass (halves HBM traffic of the dominant adjacency/support streams):
    # looser tolerance is purely due to bf16 storage of M/A and S.
    out_bf16 = mhgcn_forward(x, all_adj, rel_w, weights, biases,
                             compute_dtype=jnp.bfloat16, tile=512)
    out_bf16 = jax.block_until_ready(out_bf16)
    assert out_bf16.shape == (N, D_OUT)
    assert bool(jnp.all(jnp.isfinite(out_bf16)))
    assert jnp.allclose(out_bf16, ref, atol=0.25, rtol=0.05), "bf16 sanity check failed"

    print("KERNEL_OK")
</pallas_src>

<mosaic_0001>
module attributes {stable_mosaic.version = 11 : i64} {
  func.func @_sym_adj_kernel(%arg0: i32, %arg1: i32, %arg2: memref<1xi32, #tpu.memory_space<smem>>, %arg3: memref<1xi32, #tpu.memory_space<smem>>, %arg4: memref<256x256xf32, #tpu.memory_space<vmem>>, %arg5: memref<256x256xf32, #tpu.memory_space<vmem>>, %arg6: memref<256x256xf32, #tpu.memory_space<vmem>>) attributes {dimension_semantics = [#tpu.dimension_semantics<parallel>, #tpu.dimension_semantics<arbitrary>], iteration_bounds = array<i64: 1, 2>, scalar_prefetch = 2 : i64, scratch_operands = 0 : i64, tpu.core_type = #tpu.core_type<tc>, window_params = [{transform_indices = @transform_0, window_bounds = array<i64: 256, 256>}, {transform_indices = @transform_1, window_bounds = array<i64: 256, 256>}, {transform_indices = @transform_2, window_bounds = array<i64: 256, 256>}]} {
    %c0_i32 = arith.constant 0 : i32
    %0 = arith.cmpi eq, %arg1, %c0_i32 : i32
    %1 = arith.extui %0 : i1 to i32
    %c0_i32_0 = arith.constant 0 : i32
    %2 = arith.cmpi ne, %1, %c0_i32_0 : i32
    scf.if %2 {
      %c0 = arith.constant 0 : index
      %c0_2 = arith.constant 0 : index
      %6 = vector.load %arg4[%c0, %c0_2] : memref<256x256xf32, #tpu.memory_space<vmem>>, vector<256x256xf32>
      %c0_3 = arith.constant 0 : index
      %c0_4 = arith.constant 0 : index
      %7 = vector.load %arg5[%c0_3, %c0_4] : memref<256x256xf32, #tpu.memory_space<vmem>>, vector<256x256xf32>
      %8 = tpu.transpose %7, [1, 0] : vector<256x256xf32> -> vector<256x256xf32>
      %9 = arith.addf %6, %8 : vector<256x256xf32>
      %c0_5 = arith.constant 0 : index
      %c0_6 = arith.constant 0 : index
      %10 = vector.load %arg6[%c0_5, %c0_6] : memref<256x256xf32, #tpu.memory_space<vmem>>, vector<256x256xf32>
      tpu.vector_store %arg6[%c0_5, %c0_6], %9 {strides = array<i32>} : memref<256x256xf32, #tpu.memory_space<vmem>>, vector<256x256xf32>,
    } else {
    }
    %c1_i32 = arith.constant 1 : i32
    %3 = arith.cmpi eq, %arg1, %c1_i32 : i32
    %4 = arith.extui %3 : i1 to i32
    %c0_i32_1 = arith.constant 0 : i32
    %5 = arith.cmpi ne, %4, %c0_i32_1 : i32
    scf.if %5 {
      %c0 = arith.constant 0 : index
      %c0_2 = arith.constant 0 : index
      %6 = vector.load %arg5[%c0, %c0_2] : memref<256x256xf32, #tpu.memory_space<vmem>>, vector<256x256xf32>
      %c0_3 = arith.constant 0 : index
      %c0_4 = arith.constant 0 : index
      %7 = vector.load %arg4[%c0_3, %c0_4] : memref<256x256xf32, #tpu.memory_space<vmem>>, vector<256x256xf32>
      %8 = tpu.transpose %7, [1, 0] : vector<256x256xf32> -> vector<256x256xf32>
      %9 = arith.addf %6, %8 : vector<256x256xf32>
      %c0_5 = arith.constant 0 : index
      %c0_6 = arith.constant 0 : index
      %10 = vector.load %arg6[%c0_5, %c0_6] : memref<256x256xf32, #tpu.memory_space<vmem>>, vector<256x256xf32>
      tpu.vector_store %arg6[%c0_5, %c0_6], %9 {strides = array<i32>} : memref<256x256xf32, #tpu.memory_space<vmem>>, vector<256x256xf32>,
    } else {
    }
    return
  }
  func.func @transform_0(%arg0: i32, %arg1: i32, %arg2: memref<1xi32, #tpu.memory_space<smem>>, %arg3: memref<1xi32, #tpu.memory_space<smem>>) -> (i32, i32) {
    %0 = arith.index_cast %arg0 : i32 to index
    %1 = memref.load %arg2[%0] : memref<1xi32, #tpu.memory_space<smem>>
    %2 = arith.index_cast %arg0 : i32 to index
    %3 = memref.load %arg3[%2] : memref<1xi32, #tpu.memory_space<smem>>
    %c0_i32 = arith.constant 0 : i32
    return %1, %3 : i32, i32
  }
  func.func @transform_1(%arg0: i32, %arg1: i32, %arg2: memref<1xi32, #tpu.memory_space<smem>>, %arg3: memref<1xi32, #tpu.memory_space<smem>>) -> (i32, i32) {
    %0 = arith.index_cast %arg0 : i32 to index
    %1 = memref.load %arg3[%0] : memref<1xi32, #tpu.memory_space<smem>>
    %2 = arith.index_cast %arg0 : i32 to index
    %3 = memref.load %arg2[%2] : memref<1xi32, #tpu.memory_space<smem>>
    %c0_i32 = arith.constant 0 : i32
    return %1, %3 : i32, i32
  }
  func.func @transform_2(%arg0: i32, %arg1: i32, %arg2: memref<1xi32, #tpu.memory_space<smem>>, %arg3: memref<1xi32, #tpu.memory_space<smem>>) -> (i32, i32) {
    %c0_i32 = arith.constant 0 : i32
    %0 = arith.cmpi eq, %arg1, %c0_i32 : i32
    %1 = arith.index_cast %arg0 : i32 to index
    %2 = memref.load %arg2[%1] : memref<1xi32, #tpu.memory_space<smem>>
    %3 = arith.index_cast %arg0 : i32 to index
    %4 = memref.load %arg3[%3] : memref<1xi32, #tpu.memory_space<smem>>
    %5 = arith.select %0, %2, %4 : i32
    %c0_i32_0 = arith.constant 0 : i32
    %6 = arith.cmpi eq, %arg1, %c0_i32_0 : i32
    %7 = arith.index_cast %arg0 : i32 to index
    %8 = memref.load %arg3[%7] : memref<1xi32, #tpu.memory_space<smem>>
    %9 = arith.index_cast %arg0 : i32 to index
    %10 = memref.load %arg2[%9] : memref<1xi32, #tpu.memory_space<smem>>
    %11 = arith.select %6, %8, %10 : i32
    %c0_i32_1 = arith.constant 0 : i32
    return %5, %11 : i32, i32
  }
}

</mosaic_0001>

<llo_original>
// kernel: tpu_custom_call.1
$region0: #{tpu_custom_call.1}
  #allocation0 [shape = 'u32[]', space=smem, size = 0x4, offset = 0x4, fixed_abs, tag = 'smem constant byte address 0x4 - core index']
  #allocation1 [shape = 'u32[72,128]{1,0:T(1,128)}', space=vmem, size = 0x9000, scoped, tag = 'internal scratch']
  #allocation2 [shape = 's32[1]{0}', space=sflag, size = 0x4, scoped, tag = 'scoped memory for tpu_custom_call.1']
  #allocation3 [shape = 's32[1]{0:T(128)S(6)}', space=smem, size = 0x200, scoped, tag = 'prefetched SMEM operand 0']
  #allocation4 [shape = 's32[1]{0:T(128)S(6)}', space=smem, size = 0x200, scoped, tag = 'prefetched SMEM operand 1']
  %s0 = inlined_call_operand.<no memory space> [shape: s32[1], index: 0, kind: input, shape index: {}]
  %s1 = inlined_call_operand.<no memory space> [shape: s32[1], index: 1, kind: input, shape index: {}]
  %s2 = inlined_call_operand.hbm [shape: f32[256,256], index: 2, kind: input, shape index: {}]
  %s3 = inlined_call_operand.hbm [shape: f32[256,256], index: 3, kind: input, shape index: {}]
  %s4 = inlined_call_operand.hbm [shape: f32[256,256], index: 4, kind: output, shape index: {}]
  %s5 = sld [smem:[#allocation0]]
  $region57: #{tpu_custom_call.1} parent=0
    _
  %s7 = ssub.s32 1, %s5
  %s8 = scalar_select 0, %s7, %s5
  %9 = sst [smem:[#allocation3]] %s0
  %10 = sst [smem:[#allocation4]] %s1
  $region1: #{tpu_custom_call.1} parent=0
    #allocation5 [shape = 'u8[262144]{0}', space=vmem, size = 0x40000, scoped, tag = 'input window, operand 2, single buffered']
    #allocation6 [shape = 's32[2]{0}', space=sflag, size = 0x8, scoped, tag = 'scoped memory for tpu_custom_call.1']
    #allocation7 [shape = 's32[2]{0}', space=sflag, size = 0x8, scoped, tag = 'scoped memory for tpu_custom_call.1']
    #allocation8 [shape = 'u8[262144]{0}', space=vmem, size = 0x40000, scoped, tag = 'input window, operand 3, single buffered']
    #allocation9 [shape = 's32[1]{0}', space=sflag, size = 0x4, scoped, tag = 'scoped memory for tpu_custom_call.1']
    #allocation10 [shape = 'u8[524288]{0}', space=vmem, size = 0x80000, scoped, tag = 'output window, operand 0']
    %11 = vsyncpa [#allocation6], 0
    %12 = vsyncpa [#allocation9], 0
    %13 = vsyncpa [#allocation7], 0
    %s14 = scalar_lea.sflag [#allocation7], 1
    %15 = vsyncpa %s14, 0
    loop: start=0, step=1, limit=4
    $region2: #{tpu_custom_call.1} parent=1 // loop_pre_header
      _
    $region3: #{tpu_custom_call.1} parent=1 // loop_header
      %s17 = sphi 0, %s21
      %p18 = scmp.ge.s32.totalorder %s17, 4
      %s24 = sphi 0, %s36
      %s25 = sphi 0, %s32
      %s26 = sphi 0, %s24
      %s27 = sphi 0, %s25
      %s28 = sphi 0, %s26
      %s29 = sphi 0, %s27
      %s45 = sphi 0, %s47
      %s48 = sphi 0, %s45
      %s49 = sphi 0, %s48
      %s65 = sphi 0, %s49
      %s77 = sphi 0, %s79
      %s80 = sphi 0, %s77
      %s81 = sphi 0, %s80
      %s97 = sphi 0, %s81
      %s115 = sphi 0, %s117
      %s118 = sphi 0, %s115
      %s119 = sphi 0, %s118
      %s135 = sphi 0, %s119
    $region4: #{tpu_custom_call.1} parent=1 // loop_header_branch
      %20 = sbr.rel (%p18) target = $region8
    $region5: #{tpu_custom_call.1} parent=1 // loop_body
      %s22 = ssub.s32 %s17, 1
      %s23 = ssub.s32 %s17, 2
      %s30 = sadd.s32 1, %s25
      %p31 = scmp.ge.s32.totalorder %s30, 2
      %s32 = scalar_select %p31, 0, %s30
      %s33 = sadd.s32 1, %s24
      %s34 = scalar_select %p31, %s33, %s24
      %p35 = scmp.ge.s32.totalorder %s34, 1
      %s36 = scalar_select %p35, 0, %s34
      %s37 = sld [smem:[#allocation3 + %s24]]
      %s38 = sld [smem:[#allocation4 + %s24]]
      %s39 = sld [smem:[#allocation3 + %s36]]
      %s40 = sld [smem:[#allocation4 + %s36]]
      %s41 = ssub.s32 %s37, %s39
      %s42 = ssub.s32 %s38, %s40
      %s43 = sor.u32 %s41, %s42
      %p44 = scmp.eq.s32.totalorder %s43, 0
      %s46 = sadd.s32 %s45, 1
      %s47 = scalar_select %p44, %s45, %s46
      %p50 = pneg %p44
      %p51 = scmp.eq.s32.totalorder %s17, 1
      %p52 = por %p50, %p51
      %p53 = scmp.ne.s32.totalorder %s45, %s48
      %p54 = scmp.eq.s32.totalorder %s17, 0
      %p55 = por %p53, %p54
      %p56 = scmp.ne.s32.totalorder %s45, %s48
      %p57 = scmp.eq.s32.totalorder %s22, 1
      %p58 = por %p56, %p57
      %p59 = scmp.ne.s32.totalorder %s48, %s49
      %p60 = scmp.eq.s32.totalorder %s22, 0
      %p61 = por %p59, %p60
      %p62 = scmp.ne.s32.totalorder %s48, %s49
      %p63 = scmp.eq.s32.totalorder %s23, 1
      %p64 = por %p62, %p63
      %p66 = scmp.ne.s32.totalorder %s49, %s65
      %p67 = scmp.eq.s32.totalorder %s23, 0
      %p68 = por %p66, %p67
      %s69 = sld [smem:[#allocation4 + %s24]]
      %s70 = sld [smem:[#allocation3 + %s24]]
      %s71 = sld [smem:[#allocation4 + %s36]]
      %s72 = sld [smem:[#allocation3 + %s36]]
      %s73 = ssub.s32 %s69, %s71
      %s74 = ssub.s32 %s70, %s72
      %s75 = sor.u32 %s73, %s74
      %p76 = scmp.eq.s32.totalorder %s75, 0
      %s78 = sadd.s32 %s77, 1
      %s79 = scalar_select %p76, %s77, %s78
      %p82 = pneg %p76
      %p83 = scmp.eq.s32.totalorder %s17, 1
      %p84 = por %p82, %p83
      %p85 = scmp.ne.s32.totalorder %s77, %s80
      %p86 = scmp.eq.s32.totalorder %s17, 0
      %p87 = por %p85, %p86
      %p88 = scmp.ne.s32.totalorder %s77, %s80
      %p89 = scmp.eq.s32.totalorder %s22, 1
      %p90 = por %p88, %p89
      %p91 = scmp.ne.s32.totalorder %s80, %s81
      %p92 = scmp.eq.s32.totalorder %s22, 0
      %p93 = por %p91, %p92
      %p94 = scmp.ne.s32.totalorder %s80, %s81
      %p95 = scmp.eq.s32.totalorder %s23, 1
      %p96 = por %p94, %p95
      %p98 = scmp.ne.s32.totalorder %s81, %s97
      %p99 = scmp.eq.s32.totalorder %s23, 0
      %p100 = por %p98, %p99
      %p101 = scmp.eq.s32.totalorder %s25, 0
      %s102 = sld [smem:[#allocation3 + %s24]]
      %s103 = sld [smem:[#allocation4 + %s24]]
      %s104 = scalar_select %p101, %s102, %s103
      %s105 = scalar_select %p101, %s103, %s102
      %p106 = scmp.eq.s32.totalorder %s32, 0
      %s107 = sld [smem:[#allocation3 + %s36]]
      %s108 = sld [smem:[#allocation4 + %s36]]
      %s109 = scalar_select %p106, %s107, %s108
      %s110 = scalar_select %p106, %s108, %s107
      %s111 = ssub.s32 %s104, %s109
      %s112 = ssub.s32 %s105, %s110
      %s113 = sor.u32 %s111, %s112
      %p114 = scmp.eq.s32.totalorder %s113, 0
      %s116 = sadd.s32 %s115, 1
      %s117 = scalar_select %p114, %s115, %s116
      %p120 = pneg %p114
      %p121 = scmp.eq.s32.totalorder %s17, 1
      %p122 = por %p120, %p121
      %p123 = scmp.ne.s32.totalorder %s115, %s118
      %p124 = scmp.eq.s32.totalorder %s17, 0
      %p125 = por %p123, %p124
      %p126 = scmp.ne.s32.totalorder %s115, %s118
      %p127 = scmp.eq.s32.totalorder %s22, 1
      %p128 = por %p126, %p127
      %p129 = scmp.ne.s32.totalorder %s118, %s119
      %p130 = scmp.eq.s32.totalorder %s22, 0
      %p131 = por %p129, %p130
      %p132 = scmp.ne.s32.totalorder %s118, %s119
      %p133 = scmp.eq.s32.totalorder %s23, 1
      %p134 = por %p132, %p133
      %p136 = scmp.ne.s32.totalorder %s119, %s135
      %p137 = scmp.eq.s32.totalorder %s23, 0
      %p138 = por %p136, %p137
      %p139 = scmp.le.s32.totalorder 1, %s17
      %p140 = scmp.lt.s32.totalorder %s17, 3
      %p141 = pnand %p139, %p140
      %p142 = pneg %p141
      // Predicated region
      $region9: #{tpu_custom_call.1} parent=5 // pred_check
        _
      $region10: #{tpu_custom_call.1} parent=5 // pred_check_branch
        %144 = sbr.rel (%p141) target = $region12
      $region11: #{tpu_custom_call.1} parent=5 // pred_region
        %s145 = ssub.s32 %s17, 1
        // Predicated region
        $region13: #{tpu_custom_call.1} parent=11 // pred_check
          %p146 = pneg %p61
        $region14: #{tpu_custom_call.1} parent=11 // pred_check_branch
          %148 = sbr.rel (%p146) target = $region16
        $region15: #{tpu_custom_call.1} parent=11 // pred_region
          %s149 = sld [smem:[#allocation3 + %s26]]
          %s150 = sld [smem:[#allocation4 + %s26]]
          %s151 = smul.u32 32, %s149
          %s152 = smul.u32 2, %s150
          %154 = vsyncadd [#allocation6], 0
          %s155 = smul.addr %s151, 2
          %s156 = sadd.s32 %s152, %s155
          %s157 = smul.addr %s156, 8
          %s158 = scalar_lea.hbm %s2, %s157
          %s159 = sshll.u32 %s158, 4
          %s160 = int_to_ptr.hbm [resolvable:$true] %s159
          %s161 = sshll.u32 [#allocation5], 4
          %s162 = int_to_ptr.vmem [resolvable:$true] %s161
          %167 = dma.hbm_to_vmem [thread:$0]  %s160, 8192, %s162, [#allocation6], 256, 256, 16
        $region16: #{tpu_custom_call.1} parent=11 // pred_fallthru
          _
        // Predicated region
        $region17: #{tpu_custom_call.1} parent=11 // pred_check
          %p168 = pneg %p93
        $region18: #{tpu_custom_call.1} parent=11 // pred_check_branch
          %170 = sbr.rel (%p168) target = $region20
        $region19: #{tpu_custom_call.1} parent=11 // pred_region
          %s171 = sld [smem:[#allocation4 + %s26]]
          %s172 = sld [smem:[#allocation3 + %s26]]
          %s173 = smul.u32 32, %s171
          %s174 = smul.u32 2, %s172
          %176 = vsyncadd [#allocation9], 0
          %s177 = smul.addr %s173, 2
          %s178 = sadd.s32 %s174, %s177
          %s179 = smul.addr %s178, 8
          %s180 = scalar_lea.hbm %s3, %s179
          %s181 = sshll.u32 %s180, 4
          %s182 = int_to_ptr.hbm [resolvable:$true] %s181
          %s183 = sshll.u32 [#allocation8], 4
          %s184 = int_to_ptr.vmem [resolvable:$true] %s183
          %189 = dma.hbm_to_vmem [thread:$0]  %s182, 8192, %s184, [#allocation9], 256, 256, 16
        $region20: #{tpu_custom_call.1} parent=11 // pred_fallthru
          _
      $region12: #{tpu_custom_call.1} parent=5 // pred_fallthru
        _
      %p190 = scmp.lt.s32.totalorder %s17, 2
      // Predicated region
      $region21: #{tpu_custom_call.1} parent=5 // pred_check
        %p191 = pneg %p190
      $region22: #{tpu_custom_call.1} parent=5 // pred_check_branch
        %193 = sbr.rel (%p191) target = $region24
      $region23: #{tpu_custom_call.1} parent=5 // pred_region
        _
      $region24: #{tpu_custom_call.1} parent=5 // pred_fallthru
        _
      %p194 = scmp.le.s32.totalorder 1, %s17
      %p195 = scmp.lt.s32.totalorder %s17, 3
      %p196 = pnand %p194, %p195
      %p197 = pneg %p196
      // Predicated region
      $region25: #{tpu_custom_call.1} parent=5 // pred_check
        _
      $region26: #{tpu_custom_call.1} parent=5 // pred_check_branch
        %199 = sbr.rel (%p196) target = $region28
      $region27: #{tpu_custom_call.1} parent=5 // pred_region
        %s200 = ssub.s32 %s17, 1
        // Predicated region
        $region29: #{tpu_custom_call.1} parent=27 // pred_check
          %p201 = pneg %p61
        $region30: #{tpu_custom_call.1} parent=27 // pred_check_branch
          %203 = sbr.rel (%p201) target = $region32
        $region31: #{tpu_custom_call.1} parent=27 // pred_region
          %205 = dma.done [#allocation6], 8192
        $region32: #{tpu_custom_call.1} parent=27 // pred_fallthru
          _
        // Predicated region
        $region33: #{tpu_custom_call.1} parent=27 // pred_check
          %p206 = pneg %p93
        $region34: #{tpu_custom_call.1} parent=27 // pred_check_branch
          %208 = sbr.rel (%p206) target = $region36
        $region35: #{tpu_custom_call.1} parent=27 // pred_region
          %210 = dma.done [#allocation9], 8192
        $region36: #{tpu_custom_call.1} parent=27 // pred_fallthru
          _
        %p211 = pneg %p61
        %p212 = pneg %p58
        %p213 = pneg %p93
        %p214 = pneg %p90
        %p215 = pneg %p131
        %p216 = pneg %p128
        %s217 = sand.u32 %s118, 1
        %s218 = scalar_lea.sflag [#allocation7], %s217
        %s219 = sand.u32 %s118, 1
        %s220 = smul.addr %s219, 512
        %s221 = scalar_lea.vmem [#allocation10], %s220
        %s222 = sld [smem:[#allocation3 + %s26]]
        %s223 = sld [smem:[#allocation4 + %s26]]
        %s224 = smul.u32 32, %s222
        %s225 = smul.u32 2, %s223
        %s226 = sld [smem:[#allocation4 + %s26]]
        %s227 = sld [smem:[#allocation3 + %s26]]
        %s228 = smul.u32 32, %s226
        %s229 = smul.u32 2, %s227
        %p230 = scmp.eq.s32.totalorder %s27, 0
        %s231 = sld [smem:[#allocation3 + %s26]]
        %s232 = sld [smem:[#allocation4 + %s26]]
        %s233 = scalar_select %p230, %s231, %s232
        %s234 = scalar_select %p230, %s232, %s231
        %s235 = smul.u32 32, %s233
        %s236 = smul.u32 2, %s234
        %p237 = scmp.eq.s32.totalorder %s27, 0
        // Predicated region
        $region37: #{tpu_custom_call.1} parent=27 // pred_check
          %p238 = pneg %p237
        $region38: #{tpu_custom_call.1} parent=27 // pred_check_branch
          %240 = sbr.rel (%p238) target = $region40
        $region39: #{tpu_custom_call.1} parent=27 // pred_region
          %v241 = vld [vmem:[#allocation5] sm:$0xff]
          %v242 = vld [vmem:[#allocation5 + $0x8] sm:$0xff]
          %v243 = vld [vmem:[#allocation5 + $0x10] sm:$0xff]
          %v244 = vld [vmem:[#allocation5 + $0x18] sm:$0xff]
          %v245 = vld [vmem:[#allocation5 + $0x20] sm:$0xff]
          %v246 = vld [vmem:[#allocation5 + $0x28] sm:$0xff]
          %v247 = vld [vmem:[#allocation5 + $0x30] sm:$0xff]
          %v248 = vld [vmem:[#allocation5 + $0x38] sm:$0xff]
          %v249 = vld [vmem:[#allocation5 + $0x40] sm:$0xff]
          %v250 = vld [vmem:[#allocation5 + $0x48] sm:$0xff]
          %v251 = vld [vmem:[#allocation5 + $0x50] sm:$0xff]
          %v252 = vld [vmem:[#allocation5 + $0x58] sm:$0xff]
          %v253 = vld [vmem:[#allocation5 + $0x60] sm:$0xff]
          %v254 = vld [vmem:[#allocation5 + $0x68] sm:$0xff]
          %v255 = vld [vmem:[#allocation5 + $0x70] sm:$0xff]
          %v256 = vld [vmem:[#allocation5 + $0x78] sm:$0xff]
          %v257 = vld [vmem:[#allocation5 + $0x80] sm:$0xff]
          %v258 = vld [vmem:[#allocation5 + $0x88] sm:$0xff]
          %v259 = vld [vmem:[#allocation5 + $0x90] sm:$0xff]
          %v260 = vld [vmem:[#allocation5 + $0x98] sm:$0xff]
          %v261 = vld [vmem:[#allocation5 + $0xa0] sm:$0xff]
          %v262 = vld [vmem:[#allocation5 + $0xa8] sm:$0xff]
          %v263 = vld [vmem:[#allocation5 + $0xb0] sm:$0xff]
          %v264 = vld [vmem:[#allocation5 + $0xb8] sm:$0xff]
          %v265 = vld [vmem:[#allocation5 + $0xc0] sm:$0xff]
          %v266 = vld [vmem:[#allocation5 + $0xc8] sm:$0xff]
          %v267 = vld [vmem:[#allocation5 + $0xd0] sm:$0xff]
          %v268 = vld [vmem:[#allocation5 + $0xd8] sm:$0xff]
          %v269 = vld [vmem:[#allocation5 + $0xe0] sm:$0xff]
          %v270 = vld [vmem:[#allocation5 + $0xe8] sm:$0xff]
          %v271 = vld [vmem:[#allocation5 + $0xf0] sm:$0xff]
          %v272 = vld [vmem:[#allocation5 + $0xf8] sm:$0xff]
          %v273 = vld [vmem:[#allocation5 + $0x100] sm:$0xff]
          %v274 = vld [vmem:[#allocation5 + $0x108] sm:$0xff]
          %v275 = vld [vmem:[#allocation5 + $0x110] sm:$0xff]
          %v276 = vld [vmem:[#allocation5 + $0x118] sm:$0xff]
          %v277 = vld [vmem:[#allocation5 + $0x120] sm:$0xff]
          %v278 = vld [vmem:[#allocation5 + $0x128] sm:$0xff]
          %v279 = vld [vmem:[#allocation5 + $0x130] sm:$0xff]
          %v280 = vld [vmem:[#allocation5 + $0x138] sm:$0xff]
          %v281 = vld [vmem:[#allocation5 + $0x140] sm:$0xff]
          %v282 = vld [vmem:[#allocation5 + $0x148] sm:$0xff]
          %v283 = vld [vmem:[#allocation5 + $0x150] sm:$0xff]
          %v284 = vld [vmem:[#allocation5 + $0x158] sm:$0xff]
          %v285 = vld [vmem:[#allocation5 + $0x160] sm:$0xff]
          %v286 = vld [vmem:[#allocation5 + $0x168] sm:$0xff]
          %v287 = vld [vmem:[#allocation5 + $0x170] sm:$0xff]
          %v288 = vld [vmem:[#allocation5 + $0x178] sm:$0xff]
          %v289 = vld [vmem:[#allocation5 + $0x180] sm:$0xff]
          %v290 = vld [vmem:[#allocation5 + $0x188] sm:$0xff]
          %v291 = vld [vmem:[#allocation5 + $0x190] sm:$0xff]
          %v292 = vld [vmem:[#allocation5 + $0x198] sm:$0xff]
          %v293 = vld [vmem:[#allocation5 + $0x1a0] sm:$0xff]
          %v294 = vld [vmem:[#allocation5 + $0x1a8] sm:$0xff]
          %v295 = vld [vmem:[#allocation5 + $0x1b0] sm:$0xff]
          %v296 = vld [vmem:[#allocation5 + $0x1b8] sm:$0xff]
          %v297 = vld [vmem:[#allocation5 + $0x1c0] sm:$0xff]
          %v298 = vld [vmem:[#allocation5 + $0x1c8] sm:$0xff]
          %v299 = vld [vmem:[#allocation5 + $0x1d0] sm:$0xff]
          %v300 = vld [vmem:[#allocation5 + $0x1d8] sm:$0xff]
          %v301 = vld [vmem:[#allocation5 + $0x1e0] sm:$0xff]
          %v302 = vld [vmem:[#allocation5 + $0x1e8] sm:$0xff]
          %v303 = vld [vmem:[#allocation5 + $0x1f0] sm:$0xff]
          %v304 = vld [vmem:[#allocation5 + $0x1f8] sm:$0xff]
          %v305 = vld [vmem:[#allocation8] sm:$0xff]
          %v306 = vld [vmem:[#allocation8 + $0x8] sm:$0xff]
          %v307 = vld [vmem:[#allocation8 + $0x10] sm:$0xff]
          %v308 = vld [vmem:[#allocation8 + $0x18] sm:$0xff]
          %v309 = vld [vmem:[#allocation8 + $0x20] sm:$0xff]
          %v310 = vld [vmem:[#allocation8 + $0x28] sm:$0xff]
          %v311 = vld [vmem:[#allocation8 + $0x30] sm:$0xff]
          %v312 = vld [vmem:[#allocation8 + $0x38] sm:$0xff]
          %v313 = vld [vmem:[#allocation8 + $0x40] sm:$0xff]
          %v314 = vld [vmem:[#allocation8 + $0x48] sm:$0xff]
          %v315 = vld [vmem:[#allocation8 + $0x50] sm:$0xff]
          %v316 = vld [vmem:[#allocation8 + $0x58] sm:$0xff]
          %v317 = vld [vmem:[#allocation8 + $0x60] sm:$0xff]
          %v318 = vld [vmem:[#allocation8 + $0x68] sm:$0xff]
          %v319 = vld [vmem:[#allocation8 + $0x70] sm:$0xff]
          %v320 = vld [vmem:[#allocation8 + $0x78] sm:$0xff]
          %v321 = vld [vmem:[#allocation8 + $0x80] sm:$0xff]
          %v322 = vld [vmem:[#allocation8 + $0x88] sm:$0xff]
          %v323 = vld [vmem:[#allocation8 + $0x90] sm:$0xff]
          %v324 = vld [vmem:[#allocation8 + $0x98] sm:$0xff]
          %v325 = vld [vmem:[#allocation8 + $0xa0] sm:$0xff]
          %v326 = vld [vmem:[#allocation8 + $0xa8] sm:$0xff]
          %v327 = vld [vmem:[#allocation8 + $0xb0] sm:$0xff]
          %v328 = vld [vmem:[#allocation8 + $0xb8] sm:$0xff]
          %v329 = vld [vmem:[#allocation8 + $0xc0] sm:$0xff]
          %v330 = vld [vmem:[#allocation8 + $0xc8] sm:$0xff]
          %v331 = vld [vmem:[#allocation8 + $0xd0] sm:$0xff]
          %v332 = vld [vmem:[#allocation8 + $0xd8] sm:$0xff]
          %v333 = vld [vmem:[#allocation8 + $0xe0] sm:$0xff]
          %v334 = vld [vmem:[#allocation8 + $0xe8] sm:$0xff]
          %v335 = vld [vmem:[#allocation8 + $0xf0] sm:$0xff]
          %v336 = vld [vmem:[#allocation8 + $0xf8] sm:$0xff]
          %v337 = vld [vmem:[#allocation8 + $0x100] sm:$0xff]
          %v338 = vld [vmem:[#allocation8 + $0x108] sm:$0xff]
          %v339 = vld [vmem:[#allocation8 + $0x110] sm:$0xff]
          %v340 = vld [vmem:[#allocation8 + $0x118] sm:$0xff]
          %v341 = vld [vmem:[#allocation8 + $0x120] sm:$0xff]
          %v342 = vld [vmem:[#allocation8 + $0x128] sm:$0xff]
          %v343 = vld [vmem:[#allocation8 + $0x130] sm:$0xff]
          %v344 = vld [vmem:[#allocation8 + $0x138] sm:$0xff]
          %v345 = vld [vmem:[#allocation8 + $0x140] sm:$0xff]
          %v346 = vld [vmem:[#allocation8 + $0x148] sm:$0xff]
          %v347 = vld [vmem:[#allocation8 + $0x150] sm:$0xff]
          %v348 = vld [vmem:[#allocation8 + $0x158] sm:$0xff]
          %v349 = vld [vmem:[#allocation8 + $0x160] sm:$0xff]
          %v350 = vld [vmem:[#allocation8 + $0x168] sm:$0xff]
          %v351 = vld [vmem:[#allocation8 + $0x170] sm:$0xff]
          %v352 = vld [vmem:[#allocation8 + $0x178] sm:$0xff]
          %v353 = vld [vmem:[#allocation8 + $0x180] sm:$0xff]
          %v354 = vld [vmem:[#allocation8 + $0x188] sm:$0xff]
          %v355 = vld [vmem:[#allocation8 + $0x190] sm:$0xff]
          %v356 = vld [vmem:[#allocation8 + $0x198] sm:$0xff]
          %v357 = vld [vmem:[#allocation8 + $0x1a0] sm:$0xff]
          %v358 = vld [vmem:[#allocation8 + $0x1a8] sm:$0xff]
          %v359 = vld [vmem:[#allocation8 + $0x1b0] sm:$0xff]
          %v360 = vld [vmem:[#allocation8 + $0x1b8] sm:$0xff]
          %v361 = vld [vmem:[#allocation8 + $0x1c0] sm:$0xff]
          %v362 = vld [vmem:[#allocation8 + $0x1c8] sm:$0xff]
          %v363 = vld [vmem:[#allocation8 + $0x1d0] sm:$0xff]
          %v364 = vld [vmem:[#allocation8 + $0x1d8] sm:$0xff]
          %v365 = vld [vmem:[#allocation8 + $0x1e0] sm:$0xff]
          %v366 = vld [vmem:[#allocation8 + $0x1e8] sm:$0xff]
          %v367 = vld [vmem:[#allocation8 + $0x1f0] sm:$0xff]
          %v368 = vld [vmem:[#allocation8 + $0x1f8] sm:$0xff]
          %369 = vxpose.xlu0.b32.start [1/16] %v305, 128
          %370 = vxpose.xlu0.b32.cont [2/16] %v307, 128
          %371 = vxpose.xlu0.b32.cont [3/16] %v309, 128
          %372 = vxpose.xlu0.b32.cont [4/16] %v311, 128
          %373 = vxpose.xlu0.b32.cont [5/16] %v313, 128
          %374 = vxpose.xlu0.b32.cont [6/16] %v315, 128
          %375 = vxpose.xlu0.b32.cont [7/16] %v317, 128
          %376 = vxpose.xlu0.b32.cont [8/16] %v319, 128
          %377 = vxpose.xlu0.b32.cont [9/16] %v321, 128
          %378 = vxpose.xlu0.b32.cont [10/16] %v323, 128
          %379 = vxpose.xlu0.b32.cont [11/16] %v325, 128
          %380 = vxpose.xlu0.b32.cont [12/16] %v327, 128
          %381 = vxpose.xlu0.b32.cont [13/16] %v329, 128
          %382 = vxpose.xlu0.b32.cont [14/16] %v331, 128
          %383 = vxpose.xlu0.b32.cont [15/16] %v333, 128
          %384 = vxpose.xlu0.b32.end [16/16] %v335, 128
          %v385 = vpop.trf.xlu0
          %v386 = vpop.trf.xlu0
          %v387 = vpop.trf.xlu0
          %v388 = vpop.trf.xlu0
          %v389 = vpop.trf.xlu0
          %v390 = vpop.trf.xlu0
          %v391 = vpop.trf.xlu0
          %v392 = vpop.trf.xlu0
          %v393 = vpop.trf.xlu0
          %v394 = vpop.trf.xlu0
          %v395 = vpop.trf.xlu0
          %v396 = vpop.trf.xlu0
          %v397 = vpop.trf.xlu0
          %v398 = vpop.trf.xlu0
          %v399 = vpop.trf.xlu0
          %v400 = vpop.trf.xlu0
          %401 = vxpose.xlu0.b32.start [1/16] %v306, 128
          %402 = vxpose.xlu0.b32.cont [2/16] %v308, 128
          %403 = vxpose.xlu0.b32.cont [3/16] %v310, 128
          %404 = vxpose.xlu0.b32.cont [4/16] %v312, 128
          %405 = vxpose.xlu0.b32.cont [5/16] %v314, 128
          %406 = vxpose.xlu0.b32.cont [6/16] %v316, 128
          %407 = vxpose.xlu0.b32.cont [7/16] %v318, 128
          %408 = vxpose.xlu0.b32.cont [8/16] %v320, 128
          %409 = vxpose.xlu0.b32.cont [9/16] %v322, 128
          %410 = vxpose.xlu0.b32.cont [10/16] %v324, 128
          %411 = vxpose.xlu0.b32.cont [11/16] %v326, 128
          %412 = vxpose.xlu0.b32.cont [12/16] %v328, 128
          %413 = vxpose.xlu0.b32.cont [13/16] %v330, 128
          %414 = vxpose.xlu0.b32.cont [14/16] %v332, 128
          %415 = vxpose.xlu0.b32.cont [15/16] %v334, 128
          %416 = vxpose.xlu0.b32.end [16/16] %v336, 128
          %v417 = vpop.trf.xlu0
          %v418 = vpop.trf.xlu0
          %v419 = vpop.trf.xlu0
          %v420 = vpop.trf.xlu0
          %v421 = vpop.trf.xlu0
          %v422 = vpop.trf.xlu0
          %v423 = vpop.trf.xlu0
          %v424 = vpop.trf.xlu0
          %v425 = vpop.trf.xlu0
          %v426 = vpop.trf.xlu0
          %v427 = vpop.trf.xlu0
          %v428 = vpop.trf.xlu0
          %v429 = vpop.trf.xlu0
          %v430 = vpop.trf.xlu0
          %v431 = vpop.trf.xlu0
          %v432 = vpop.trf.xlu0
          %433 = vxpose.xlu0.b32.start [1/16] %v337, 128
          %434 = vxpose.xlu0.b32.cont [2/16] %v339, 128
          %435 = vxpose.xlu0.b32.cont [3/16] %v341, 128
          %436 = vxpose.xlu0.b32.cont [4/16] %v343, 128
          %437 = vxpose.xlu0.b32.cont [5/16] %v345, 128
          %438 = vxpose.xlu0.b32.cont [6/16] %v347, 128
          %439 = vxpose.xlu0.b32.cont [7/16] %v349, 128
          %440 = vxpose.xlu0.b32.cont [8/16] %v351, 128
          %441 = vxpose.xlu0.b32.cont [9/16] %v353, 128
          %442 = vxpose.xlu0.b32.cont [10/16] %v355, 128
          %443 = vxpose.xlu0.b32.cont [11/16] %v357, 128
          %444 = vxpose.xlu0.b32.cont [12/16] %v359, 128
          %445 = vxpose.xlu0.b32.cont [13/16] %v361, 128
          %446 = vxpose.xlu0.b32.cont [14/16] %v363, 128
          %447 = vxpose.xlu0.b32.cont [15/16] %v365, 128
          %448 = vxpose.xlu0.b32.end [16/16] %v367, 128
          %v449 = vpop.trf.xlu0
          %v450 = vpop.trf.xlu0
          %v451 = vpop.trf.xlu0
          %v452 = vpop.trf.xlu0
          %v453 = vpop.trf.xlu0
          %v454 = vpop.trf.xlu0
          %v455 = vpop.trf.xlu0
          %v456 = vpop.trf.xlu0
          %v457 = vpop.trf.xlu0
          %v458 = vpop.trf.xlu0
          %v459 = vpop.trf.xlu0
          %v460 = vpop.trf.xlu0
          %v461 = vpop.trf.xlu0
          %v462 = vpop.trf.xlu0
          %v463 = vpop.trf.xlu0
          %v464 = vpop.trf.xlu0
          %465 = vxpose.xlu0.b32.start [1/16] %v338, 128
          %466 = vxpose.xlu0.b32.cont [2/16] %v340, 128
          %467 = vxpose.xlu0.b32.cont [3/16] %v342, 128
          %468 = vxpose.xlu0.b32.cont [4/16] %v344, 128
          %469 = vxpose.xlu0.b32.cont [5/16] %v346, 128
          %470 = vxpose.xlu0.b32.cont [6/16] %v348, 128
          %471 = vxpose.xlu0.b32.cont [7/16] %v350, 128
          %472 = vxpose.xlu0.b32.cont [8/16] %v352, 128
          %473 = vxpose.xlu0.b32.cont [9/16] %v354, 128
          %474 = vxpose.xlu0.b32.cont [10/16] %v356, 128
          %475 = vxpose.xlu0.b32.cont [11/16] %v358, 128
          %476 = vxpose.xlu0.b32.cont [12/16] %v360, 128
          %477 = vxpose.xlu0.b32.cont [13/16] %v362, 128
          %478 = vxpose.xlu0.b32.cont [14/16] %v364, 128
          %479 = vxpose.xlu0.b32.cont [15/16] %v366, 128
          %480 = vxpose.xlu0.b32.end [16/16] %v368, 128
          %v481 = vpop.trf.xlu0
          %v482 = vpop.trf.xlu0
          %v483 = vpop.trf.xlu0
          %v484 = vpop.trf.xlu0
          %v485 = vpop.trf.xlu0
          %v486 = vpop.trf.xlu0
          %v487 = vpop.trf.xlu0
          %v488 = vpop.trf.xlu0
          %v489 = vpop.trf.xlu0
          %v490 = vpop.trf.xlu0
          %v491 = vpop.trf.xlu0
          %v492 = vpop.trf.xlu0
          %v493 = vpop.trf.xlu0
          %v494 = vpop.trf.xlu0
          %v495 = vpop.trf.xlu0
          %v496 = vpop.trf.xlu0
          %v497 = vadd.f32 %v241, %v385
          %v498 = vadd.f32 %v242, %v449
          %v499 = vadd.f32 %v243, %v386
          %v500 = vadd.f32 %v244, %v450
          %v501 = vadd.f32 %v245, %v387
          %v502 = vadd.f32 %v246, %v451
          %v503 = vadd.f32 %v247, %v388
          %v504 = vadd.f32 %v248, %v452
          %v505 = vadd.f32 %v249, %v389
          %v506 = vadd.f32 %v250, %v453
          %v507 = vadd.f32 %v251, %v390
          %v508 = vadd.f32 %v252, %v454
          %v509 = vadd.f32 %v253, %v391
          %v510 = vadd.f32 %v254, %v455
          %v511 = vadd.f32 %v255, %v392
          %v512 = vadd.f32 %v256, %v456
          %v513 = vadd.f32 %v257, %v393
          %v514 = vadd.f32 %v258, %v457
          %v515 = vadd.f32 %v259, %v394
          %v516 = vadd.f32 %v260, %v458
          %v517 = vadd.f32 %v261, %v395
          %v518 = vadd.f32 %v262, %v459
          %v519 = vadd.f32 %v263, %v396
          %v520 = vadd.f32 %v264, %v460
          %v521 = vadd.f32 %v265, %v397
          %v522 = vadd.f32 %v266, %v461
          %v523 = vadd.f32 %v267, %v398
          %v524 = vadd.f32 %v268, %v462
          %v525 = vadd.f32 %v269, %v399
          %v526 = vadd.f32 %v270, %v463
          %v527 = vadd.f32 %v271, %v400
          %v528 = vadd.f32 %v272, %v464
          %v529 = vadd.f32 %v273, %v417
          %v530 = vadd.f32 %v274, %v481
          %v531 = vadd.f32 %v275, %v418
          %v532 = vadd.f32 %v276, %v482
          %v533 = vadd.f32 %v277, %v419
          %v534 = vadd.f32 %v278, %v483
          %v535 = vadd.f32 %v279, %v420
          %v536 = vadd.f32 %v280, %v484
          %v537 = vadd.f32 %v281, %v421
          %v538 = vadd.f32 %v282, %v485
          %v539 = vadd.f32 %v283, %v422
          %v540 = vadd.f32 %v284, %v486
          %v541 = vadd.f32 %v285, %v423
          %v542 = vadd.f32 %v286, %v487
          %v543 = vadd.f32 %v287, %v424
          %v544 = vadd.f32 %v288, %v488
          %v545 = vadd.f32 %v289, %v425
          %v546 = vadd.f32 %v290, %v489
          %v547 = vadd.f32 %v291, %v426
          %v548 = vadd.f32 %v292, %v490
          %v549 = vadd.f32 %v293, %v427
          %v550 = vadd.f32 %v294, %v491
          %v551 = vadd.f32 %v295, %v428
          %v552 = vadd.f32 %v296, %v492
          %v553 = vadd.f32 %v297, %v429
          %v554 = vadd.f32 %v298, %v493
          %v555 = vadd.f32 %v299, %v430
          %v556 = vadd.f32 %v300, %v494
          %v557 = vadd.f32 %v301, %v431
          %v558 = vadd.f32 %v302, %v495
          %v559 = vadd.f32 %v303, %v432
          %v560 = vadd.f32 %v304, %v496
          %561 = vst [vmem:[%s221] sm:$0xff] %v497
          %562 = vst [vmem:[%s221 + $0x8] sm:$0xff] %v498
          %563 = vst [vmem:[%s221 + $0x10] sm:$0xff] %v499
          %564 = vst [vmem:[%s221 + $0x18] sm:$0xff] %v500
          %565 = vst [vmem:[%s221 + $0x20] sm:$0xff] %v501
          %566 = vst [vmem:[%s221 + $0x28] sm:$0xff] %v502
          %567 = vst [vmem:[%s221 + $0x30] sm:$0xff] %v503
          %568 = vst [vmem:[%s221 + $0x38] sm:$0xff] %v504
          %569 = vst [vmem:[%s221 + $0x40] sm:$0xff] %v505
          %570 = vst [vmem:[%s221 + $0x48] sm:$0xff] %v506
          %571 = vst [vmem:[%s221 + $0x50] sm:$0xff] %v507
          %572 = vst [vmem:[%s221 + $0x58] sm:$0xff] %v508
          %573 = vst [vmem:[%s221 + $0x60] sm:$0xff] %v509
          %574 = vst [vmem:[%s221 + $0x68] sm:$0xff] %v510
          %575 = vst [vmem:[%s221 + $0x70] sm:$0xff] %v511
          %576 = vst [vmem:[%s221 + $0x78] sm:$0xff] %v512
          %577 = vst [vmem:[%s221 + $0x80] sm:$0xff] %v513
          %578 = vst [vmem:[%s221 + $0x88] sm:$0xff] %v514
          %579 = vst [vmem:[%s221 + $0x90] sm:$0xff] %v515
          %580 = vst [vmem:[%s221 + $0x98] sm:$0xff] %v516
          %581 = vst [vmem:[%s221 + $0xa0] sm:$0xff] %v517
          %582 = vst [vmem:[%s221 + $0xa8] sm:$0xff] %v518
          %583 = vst [vmem:[%s221 + $0xb0] sm:$0xff] %v519
          %584 = vst [vmem:[%s221 + $0xb8] sm:$0xff] %v520
          %585 = vst [vmem:[%s221 + $0xc0] sm:$0xff] %v521
          %586 = vst [vmem:[%s221 + $0xc8] sm:$0xff] %v522
          %587 = vst [vmem:[%s221 + $0xd0] sm:$0xff] %v523
          %588 = vst [vmem:[%s221 + $0xd8] sm:$0xff] %v524
          %589 = vst [vmem:[%s221 + $0xe0] sm:$0xff] %v525
          %590 = vst [vmem:[%s221 + $0xe8] sm:$0xff] %v526
          %591 = vst [vmem:[%s221 + $0xf0] sm:$0xff] %v527
          %592 = vst [vmem:[%s221 + $0xf8] sm:$0xff] %v528
          %593 = vst [vmem:[%s221 + $0x100] sm:$0xff] %v529
          %594 = vst [vmem:[%s221 + $0x108] sm:$0xff] %v530
          %595 = vst [vmem:[%s221 + $0x110] sm:$0xff] %v531
          %596 = vst [vmem:[%s221 + $0x118] sm:$0xff] %v532
          %597 = vst [vmem:[%s221 + $0x120] sm:$0xff] %v533
          %598 = vst [vmem:[%s221 + $0x128] sm:$0xff] %v534
          %599 = vst [vmem:[%s221 + $0x130] sm:$0xff] %v535
          %600 = vst [vmem:[%s221 + $0x138] sm:$0xff] %v536
          %601 = vst [vmem:[%s221 + $0x140] sm:$0xff] %v537
          %602 = vst [vmem:[%s221 + $0x148] sm:$0xff] %v538
          %603 = vst [vmem:[%s221 + $0x150] sm:$0xff] %v539
          %604 = vst [vmem:[%s221 + $0x158] sm:$0xff] %v540
          %605 = vst [vmem:[%s221 + $0x160] sm:$0xff] %v541
          %606 = vst [vmem:[%s221 + $0x168] sm:$0xff] %v542
          %607 = vst [vmem:[%s221 + $0x170] sm:$0xff] %v543
          %608 = vst [vmem:[%s221 + $0x178] sm:$0xff] %v544
          %609 = vst [vmem:[%s221 + $0x180] sm:$0xff] %v545
          %610 = vst [vmem:[%s221 + $0x188] sm:$0xff] %v546
          %611 = vst [vmem:[%s221 + $0x190] sm:$0xff] %v547
          %612 = vst [vmem:[%s221 + $0x198] sm:$0xff] %v548
          %613 = vst [vmem:[%s221 + $0x1a0] sm:$0xff] %v549
          %614 = vst [vmem:[%s221 + $0x1a8] sm:$0xff] %v550
          %615 = vst [vmem:[%s221 + $0x1b0] sm:$0xff] %v551
          %616 = vst [vmem:[%s221 + $0x1b8] sm:$0xff] %v552
          %617 = vst [vmem:[%s221 + $0x1c0] sm:$0xff] %v553
          %618 = vst [vmem:[%s221 + $0x1c8] sm:$0xff] %v554
          %619 = vst [vmem:[%s221 + $0x1d0] sm:$0xff] %v555
          %620 = vst [vmem:[%s221 + $0x1d8] sm:$0xff] %v556
          %621 = vst [vmem:[%s221 + $0x1e0] sm:$0xff] %v557
          %622 = vst [vmem:[%s221 + $0x1e8] sm:$0xff] %v558
          %623 = vst [vmem:[%s221 + $0x1f0] sm:$0xff] %v559
          %624 = vst [vmem:[%s221 + $0x1f8] sm:$0xff] %v560
        $region40: #{tpu_custom_call.1} parent=27 // pred_fallthru
          _
        %p625 = scmp.eq.s32.totalorder %s27, 1
        // Predicated region
        $region41: #{tpu_custom_call.1} parent=27 // pred_check
          %p626 = pneg %p625
        $region42: #{tpu_custom_call.1} parent=27 // pred_check_branch
          %628 = sbr.rel (%p626) target = $region44
        $region43: #{tpu_custom_call.1} parent=27 // pred_region
          %v629 = vld [vmem:[#allocation8] sm:$0xff]
          %v630 = vld [vmem:[#allocation8 + $0x8] sm:$0xff]
          %v631 = vld [vmem:[#allocation8 + $0x10] sm:$0xff]
          %v632 = vld [vmem:[#allocation8 + $0x18] sm:$0xff]
          %v633 = vld [vmem:[#allocation8 + $0x20] sm:$0xff]
          %v634 = vld [vmem:[#allocation8 + $0x28] sm:$0xff]
          %v635 = vld [vmem:[#allocation8 + $0x30] sm:$0xff]
          %v636 = vld [vmem:[#allocation8 + $0x38] sm:$0xff]
          %v637 = vld [vmem:[#allocation8 + $0x40] sm:$0xff]
          %v638 = vld [vmem:[#allocation8 + $0x48] sm:$0xff]
          %v639 = vld [vmem:[#allocation8 + $0x50] sm:$0xff]
          %v640 = vld [vmem:[#allocation8 + $0x58] sm:$0xff]
          %v641 = vld [vmem:[#allocation8 + $0x60] sm:$0xff]
          %v642 = vld [vmem:[#allocation8 + $0x68] sm:$0xff]
          %v643 = vld [vmem:[#allocation8 + $0x70] sm:$0xff]
          %v644 = vld [vmem:[#allocation8 + $0x78] sm:$0xff]
          %v645 = vld [vmem:[#allocation8 + $0x80] sm:$0xff]
          %v646 = vld [vmem:[#allocation8 + $0x88] sm:$0xff]
          %v647 = vld [vmem:[#allocation8 + $0x90] sm:$0xff]
          %v648 = vld [vmem:[#allocation8 + $0x98] sm:$0xff]
          %v649 = vld [vmem:[#allocation8 + $0xa0] sm:$0xff]
          %v650 = vld [vmem:[#allocation8 + $0xa8] sm:$0xff]
          %v651 = vld [vmem:[#allocation8 + $0xb0] sm:$0xff]
          %v652 = vld [vmem:[#allocation8 + $0xb8] sm:$0xff]
          %v653 = vld [vmem:[#allocation8 + $0xc0] sm:$0xff]
          %v654 = vld [vmem:[#allocation8 + $0xc8] sm:$0xff]
          %v655 = vld [vmem:[#allocation8 + $0xd0] sm:$0xff]
          %v656 = vld [vmem:[#allocation8 + $0xd8] sm:$0xff]
          %v657 = vld [vmem:[#allocation8 + $0xe0] sm:$0xff]
          %v658 = vld [vmem:[#allocation8 + $0xe8] sm:$0xff]
          %v659 = vld [vmem:[#allocation8 + $0xf0] sm:$0xff]
          %v660 = vld [vmem:[#allocation8 + $0xf8] sm:$0xff]
          %v661 = vld [vmem:[#allocation8 + $0x100] sm:$0xff]
          %v662 = vld [vmem:[#allocation8 + $0x108] sm:$0xff]
          %v663 = vld [vmem:[#allocation8 + $0x110] sm:$0xff]
          %v664 = vld [vmem:[#allocation8 + $0x118] sm:$0xff]
          %v665 = vld [vmem:[#allocation8 + $0x120] sm:$0xff]
          %v666 = vld [vmem:[#allocation8 + $0x128] sm:$0xff]
          %v667 = vld [vmem:[#allocation8 + $0x130] sm:$0xff]
          %v668 = vld [vmem:[#allocation8 + $0x138] sm:$0xff]
          %v669 = vld [vmem:[#allocation8 + $0x140] sm:$0xff]
          %v670 = vld [vmem:[#allocation8 + $0x148] sm:$0xff]
          %v671 = vld [vmem:[#allocation8 + $0x150] sm:$0xff]
          %v672 = vld [vmem:[#allocation8 + $0x158] sm:$0xff]
          %v673 = vld [vmem:[#allocation8 + $0x160] sm:$0xff]
          %v674 = vld [vmem:[#allocation8 + $0x168] sm:$0xff]
          %v675 = vld [vmem:[#allocation8 + $0x170] sm:$0xff]
          %v676 = vld [vmem:[#allocation8 + $0x178] sm:$0xff]
          %v677 = vld [vmem:[#allocation8 + $0x180] sm:$0xff]
          %v678 = vld [vmem:[#allocation8 + $0x188] sm:$0xff]
          %v679 = vld [vmem:[#allocation8 + $0x190] sm:$0xff]
          %v680 = vld [vmem:[#allocation8 + $0x198] sm:$0xff]
          %v681 = vld [vmem:[#allocation8 + $0x1a0] sm:$0xff]
          %v682 = vld [vmem:[#allocation8 + $0x1a8] sm:$0xff]
          %v683 = vld [vmem:[#allocation8 + $0x1b0] sm:$0xff]
          %v684 = vld [vmem:[#allocation8 + $0x1b8] sm:$0xff]
          %v685 = vld [vmem:[#allocation8 + $0x1c0] sm:$0xff]
          %v686 = vld [vmem:[#allocation8 + $0x1c8] sm:$0xff]
          %v687 = vld [vmem:[#allocation8 + $0x1d0] sm:$0xff]
          %v688 = vld [vmem:[#allocation8 + $0x1d8] sm:$0xff]
          %v689 = vld [vmem:[#allocation8 + $0x1e0] sm:$0xff]
          %v690 = vld [vmem:[#allocation8 + $0x1e8] sm:$0xff]
          %v691 = vld [vmem:[#allocation8 + $0x1f0] sm:$0xff]
          %v692 = vld [vmem:[#allocation8 + $0x1f8] sm:$0xff]
          %v693 = vld [vmem:[#allocation5] sm:$0xff]
          %v694 = vld [vmem:[#allocation5 + $0x8] sm:$0xff]
          %v695 = vld [vmem:[#allocation5 + $0x10] sm:$0xff]
          %v696 = vld [vmem:[#allocation5 + $0x18] sm:$0xff]
          %v697 = vld [vmem:[#allocation5 + $0x20] sm:$0xff]
          %v698 = vld [vmem:[#allocation5 + $0x28] sm:$0xff]
          %v699 = vld [vmem:[#allocation5 + $0x30] sm:$0xff]
          %v700 = vld [vmem:[#allocation5 + $0x38] sm:$0xff]
          %v701 = vld [vmem:[#allocation5 + $0x40] sm:$0xff]
          %v702 = vld [vmem:[#allocation5 + $0x48] sm:$0xff]
          %v703 = vld [vmem:[#allocation5 + $0x50] sm:$0xff]
          %v704 = vld [vmem:[#allocation5 + $0x58] sm:$0xff]
          %v705 = vld [vmem:[#allocation5 + $0x60] sm:$0xff]
          %v706 = vld [vmem:[#allocation5 + $0x68] sm:$0xff]
          %v707 = vld [vmem:[#allocation5 + $0x70] sm:$0xff]
          %v708 = vld [vmem:[#allocation5 + $0x78] sm:$0xff]
          %v709 = vld [vmem:[#allocation5 + $0x80] sm:$0xff]
          %v710 = vld [vmem:[#allocation5 + $0x88] sm:$0xff]
          %v711 = vld [vmem:[#allocation5 + $0x90] sm:$0xff]
          %v712 = vld [vmem:[#allocation5 + $0x98] sm:$0xff]
          %v713 = vld [vmem:[#allocation5 + $0xa0] sm:$0xff]
          %v714 = vld [vmem:[#allocation5 + $0xa8] sm:$0xff]
          %v715 = vld [vmem:[#allocation5 + $0xb0] sm:$0xff]
          %v716 = vld [vmem:[#allocation5 + $0xb8] sm:$0xff]
          %v717 = vld [vmem:[#allocation5 + $0xc0] sm:$0xff]
          %v718 = vld [vmem:[#allocation5 + $0xc8] sm:$0xff]
          %v719 = vld [vmem:[#allocation5 + $0xd0] sm:$0xff]
          %v720 = vld [vmem:[#allocation5 + $0xd8] sm:$0xff]
          %v721 = vld [vmem:[#allocation5 + $0xe0] sm:$0xff]
          %v722 = vld [vmem:[#allocation5 + $0xe8] sm:$0xff]
          %v723 = vld [vmem:[#allocation5 + $0xf0] sm:$0xff]
          %v724 = vld [vmem:[#allocation5 + $0xf8] sm:$0xff]
          %v725 = vld [vmem:[#allocation5 + $0x100] sm:$0xff]
          %v726 = vld [vmem:[#allocation5 + $0x108] sm:$0xff]
          %v727 = vld [vmem:[#allocation5 + $0x110] sm:$0xff]
          %v728 = vld [vmem:[#allocation5 + $0x118] sm:$0xff]
          %v729 = vld [vmem:[#allocation5 + $0x120] sm:$0xff]
          %v730 = vld [vmem:[#allocation5 + $0x128] sm:$0xff]
          %v731 = vld [vmem:[#allocation5 + $0x130] sm:$0xff]
          %v732 = vld [vmem:[#allocation5 + $0x138] sm:$0xff]
          %v733 = vld [vmem:[#allocation5 + $0x140] sm:$0xff]
          %v734 = vld [vmem:[#allocation5 + $0x148] sm:$0xff]
          %v735 = vld [vmem:[#allocation5 + $0x150] sm:$0xff]
          %v736 = vld [vmem:[#allocation5 + $0x158] sm:$0xff]
          %v737 = vld [vmem:[#allocation5 + $0x160] sm:$0xff]
          %v738 = vld [vmem:[#allocation5 + $0x168] sm:$0xff]
          %v739 = vld [vmem:[#allocation5 + $0x170] sm:$0xff]
          %v740 = vld [vmem:[#allocation5 + $0x178] sm:$0xff]
          %v741 = vld [vmem:[#allocation5 + $0x180] sm:$0xff]
          %v742 = vld [vmem:[#allocation5 + $0x188] sm:$0xff]
          %v743 = vld [vmem:[#allocation5 + $0x190] sm:$0xff]
          %v744 = vld [vmem:[#allocation5 + $0x198] sm:$0xff]
          %v745 = vld [vmem:[#allocation5 + $0x1a0] sm:$0xff]
          %v746 = vld [vmem:[#allocation5 + $0x1a8] sm:$0xff]
          %v747 = vld [vmem:[#allocation5 + $0x1b0] sm:$0xff]
          %v748 = vld [vmem:[#allocation5 + $0x1b8] sm:$0xff]
          %v749 = vld [vmem:[#allocation5 + $0x1c0] sm:$0xff]
          %v750 = vld [vmem:[#allocation5 + $0x1c8] sm:$0xff]
          %v751 = vld [vmem:[#allocation5 + $0x1d0] sm:$0xff]
          %v752 = vld [vmem:[#allocation5 + $0x1d8] sm:$0xff]
          %v753 = vld [vmem:[#allocation5 + $0x1e0] sm:$0xff]
          %v754 = vld [vmem:[#allocation5 + $0x1e8] sm:$0xff]
          %v755 = vld [vmem:[#allocation5 + $0x1f0] sm:$0xff]
          %v756 = vld [vmem:[#allocation5 + $0x1f8] sm:$0xff]
          %757 = vxpose.xlu0.b32.start [1/16] %v693, 128
          %758 = vxpose.xlu0.b32.cont [2/16] %v695, 128
          %759 = vxpose.xlu0.b32.cont [3/16] %v697, 128
          %760 = vxpose.xlu0.b32.cont [4/16] %v699, 128
          %761 = vxpose.xlu0.b32.cont [5/16] %v701, 128
          %762 = vxpose.xlu0.b32.cont [6/16] %v703, 128
          %763 = vxpose.xlu0.b32.cont [7/16] %v705, 128
          %764 = vxpose.xlu0.b32.cont [8/16] %v707, 128
          %765 = vxpose.xlu0.b32.cont [9/16] %v709, 128
          %766 = vxpose.xlu0.b32.cont [10/16] %v711, 128
          %767 = vxpose.xlu0.b32.cont [11/16] %v713, 128
          %768 = vxpose.xlu0.b32.cont [12/16] %v715, 128
          %769 = vxpose.xlu0.b32.cont [13/16] %v717, 128
          %770 = vxpose.xlu0.b32.cont [14/16] %v719, 128
          %771 = vxpose.xlu0.b32.cont [15/16] %v721, 128
          %772 = vxpose.xlu0.b32.end [16/16] %v723, 128
          %v773 = vpop.trf.xlu0
          %v774 = vpop.trf.xlu0
          %v775 = vpop.trf.xlu0
          %v776 = vpop.trf.xlu0
          %v777 = vpop.trf.xlu0
          %v778 = vpop.trf.xlu0
          %v779 = vpop.trf.xlu0
          %v780 = vpop.trf.xlu0
          %v781 = vpop.trf.xlu0
          %v782 = vpop.trf.xlu0
          %v783 = vpop.trf.xlu0
          %v784 = vpop.trf.xlu0
          %v785 = vpop.trf.xlu0
          %v786 = vpop.trf.xlu0
          %v787 = vpop.trf.xlu0
          %v788 = vpop.trf.xlu0
          %789 = vxpose.xlu0.b32.start [1/16] %v694, 128
          %790 = vxpose.xlu0.b32.cont [2/16] %v696, 128
          %791 = vxpose.xlu0.b32.cont [3/16] %v698, 128
          %792 = vxpose.xlu0.b32.cont [4/16] %v700, 128
          %793 = vxpose.xlu0.b32.cont [5/16] %v702, 128
          %794 = vxpose.xlu0.b32.cont [6/16] %v704, 128
          %795 = vxpose.xlu0.b32.cont [7/16] %v706, 128
          %796 = vxpose.xlu0.b32.cont [8/16] %v708, 128
          %797 = vxpose.xlu0.b32.cont [9/16] %v710, 128
          %798 = vxpose.xlu0.b32.cont [10/16] %v712, 128
          %799 = vxpose.xlu0.b32.cont [11/16] %v714, 128
          %800 = vxpose.xlu0.b32.cont [12/16] %v716, 128
          %801 = vxpose.xlu0.b32.cont [13/16] %v718, 128
          %802 = vxpose.xlu0.b32.cont [14/16] %v720, 128
          %803 = vxpose.xlu0.b32.cont [15/16] %v722, 128
          %804 = vxpose.xlu0.b32.end [16/16] %v724, 128
          %v805 = vpop.trf.xlu0
          %v806 = vpop.trf.xlu0
          %v807 = vpop.trf.xlu0
          %v808 = vpop.trf.xlu0
          %v809 = vpop.trf.xlu0
          %v810 = vpop.trf.xlu0
          %v811 = vpop.trf.xlu0
          %v812 = vpop.trf.xlu0
          %v813 = vpop.trf.xlu0
          %v814 = vpop.trf.xlu0
          %v815 = vpop.trf.xlu0
          %v816 = vpop.trf.xlu0
          %v817 = vpop.trf.xlu0
          %v818 = vpop.trf.xlu0
          %v819 = vpop.trf.xlu0
          %v820 = vpop.trf.xlu0
          %821 = vxpose.xlu0.b32.start [1/16] %v725, 128
          %822 = vxpose.xlu0.b32.cont [2/16] %v727, 128
          %823 = vxpose.xlu0.b32.cont [3/16] %v729, 128
          %824 = vxpose.xlu0.b32.cont [4/16] %v731, 128
          %825 = vxpose.xlu0.b32.cont [5/16] %v733, 128
          %826 = vxpose.xlu0.b32.cont [6/16] %v735, 128
          %827 = vxpose.xlu0.b32.cont [7/16] %v737, 128
          %828 = vxpose.xlu0.b32.cont [8/16] %v739, 128
          %829 = vxpose.xlu0.b32.cont [9/16] %v741, 128
          %830 = vxpose.xlu0.b32.cont [10/16] %v743, 128
          %831 = vxpose.xlu0.b32.cont [11/16] %v745, 128
          %832 = vxpose.xlu0.b32.cont [12/16] %v747, 128
          %833 = vxpose.xlu0.b32.cont [13/16] %v749, 128
          %834 = vxpose.xlu0.b32.cont [14/16] %v751, 128
          %835 = vxpose.xlu0.b32.cont [15/16] %v753, 128
          %836 = vxpose.xlu0.b32.end [16/16] %v755, 128
          %v837 = vpop.trf.xlu0
          %v838 = vpop.trf.xlu0
          %v839 = vpop.trf.xlu0
          %v840 = vpop.trf.xlu0
          %v841 = vpop.trf.xlu0
          %v842 = vpop.trf.xlu0
          %v843 = vpop.trf.xlu0
          %v844 = vpop.trf.xlu0
          %v845 = vpop.trf.xlu0
          %v846 = vpop.trf.xlu0
          %v847 = vpop.trf.xlu0
          %v848 = vpop.trf.xlu0
          %v849 = vpop.trf.xlu0
          %v850 = vpop.trf.xlu0
          %v851 = vpop.trf.xlu0
          %v852 = vpop.trf.xlu0
          %853 = vxpose.xlu0.b32.start [1/16] %v726, 128
          %854 = vxpose.xlu0.b32.cont [2/16] %v728, 128
          %855 = vxpose.xlu0.b32.cont [3/16] %v730, 128
          %856 = vxpose.xlu0.b32.cont [4/16] %v732, 128
          %857 = vxpose.xlu0.b32.cont [5/16] %v734, 128
          %858 = vxpose.xlu0.b32.cont [6/16] %v736, 128
          %859 = vxpose.xlu0.b32.cont [7/16] %v738, 128
          %860 = vxpose.xlu0.b32.cont [8/16] %v740, 128
          %861 = vxpose.xlu0.b32.cont [9/16] %v742, 128
          %862 = vxpose.xlu0.b32.cont [10/16] %v744, 128
          %863 = vxpose.xlu0.b32.cont [11/16] %v746, 128
          %864 = vxpose.xlu0.b32.cont [12/16] %v748, 128
          %865 = vxpose.xlu0.b32.cont [13/16] %v750, 128
          %866 = vxpose.xlu0.b32.cont [14/16] %v752, 128
          %867 = vxpose.xlu0.b32.cont [15/16] %v754, 128
          %868 = vxpose.xlu0.b32.end [16/16] %v756, 128
          %v869 = vpop.trf.xlu0
          %v870 = vpop.trf.xlu0
          %v871 = vpop.trf.xlu0
          %v872 = vpop.trf.xlu0
          %v873 = vpop.trf.xlu0
          %v874 = vpop.trf.xlu0
          %v875 = vpop.trf.xlu0
          %v876 = vpop.trf.xlu0
          %v877 = vpop.trf.xlu0
          %v878 = vpop.trf.xlu0
          %v879 = vpop.trf.xlu0
          %v880 = vpop.trf.xlu0
          %v881 = vpop.trf.xlu0
          %v882 = vpop.trf.xlu0
          %v883 = vpop.trf.xlu0
          %v884 = vpop.trf.xlu0
          %v885 = vadd.f32 %v629, %v773
          %v886 = vadd.f32 %v630, %v837
          %v887 = vadd.f32 %v631, %v774
          %v888 = vadd.f32 %v632, %v838
          %v889 = vadd.f32 %v633, %v775
          %v890 = vadd.f32 %v634, %v839
          %v891 = vadd.f32 %v635, %v776
          %v892 = vadd.f32 %v636, %v840
          %v893 = vadd.f32 %v637, %v777
          %v894 = vadd.f32 %v638, %v841
          %v895 = vadd.f32 %v639, %v778
          %v896 = vadd.f32 %v640, %v842
          %v897 = vadd.f32 %v641, %v779
          %v898 = vadd.f32 %v642, %v843
          %v899 = vadd.f32 %v643, %v780
          %v900 = vadd.f32 %v644, %v844
          %v901 = vadd.f32 %v645, %v781
          %v902 = vadd.f32 %v646, %v845
          %v903 = vadd.f32 %v647, %v782
          %v904 = vadd.f32 %v648, %v846
          %v905 = vadd.f32 %v649, %v783
          %v906 = vadd.f32 %v650, %v847
          %v907 = vadd.f32 %v651, %v784
          %v908 = vadd.f32 %v652, %v848
          %v909 = vadd.f32 %v653, %v785
          %v910 = vadd.f32 %v654, %v849
          %v911 = vadd.f32 %v655, %v786
          %v912 = vadd.f32 %v656, %v850
          %v913 = vadd.f32 %v657, %v787
          %v914 = vadd.f32 %v658, %v851
          %v915 = vadd.f32 %v659, %v788
          %v916 = vadd.f32 %v660, %v852
          %v917 = vadd.f32 %v661, %v805
          %v918 = vadd.f32 %v662, %v869
          %v919 = vadd.f32 %v663, %v806
          %v920 = vadd.f32 %v664, %v870
          %v921 = vadd.f32 %v665, %v807
          %v922 = vadd.f32 %v666, %v871
          %v923 = vadd.f32 %v667, %v808
          %v924 = vadd.f32 %v668, %v872
          %v925 = vadd.f32 %v669, %v809
          %v926 = vadd.f32 %v670, %v873
          %v927 = vadd.f32 %v671, %v810
          %v928 = vadd.f32 %v672, %v874
          %v929 = vadd.f32 %v673, %v811
          %v930 = vadd.f32 %v674, %v875
          %v931 = vadd.f32 %v675, %v812
          %v932 = vadd.f32 %v676, %v876
          %v933 = vadd.f32 %v677, %v813
          %v934 = vadd.f32 %v678, %v877
          %v935 = vadd.f32 %v679, %v814
          %v936 = vadd.f32 %v680, %v878
          %v937 = vadd.f32 %v681, %v815
          %v938 = vadd.f32 %v682, %v879
          %v939 = vadd.f32 %v683, %v816
          %v940 = vadd.f32 %v684, %v880
          %v941 = vadd.f32 %v685, %v817
          %v942 = vadd.f32 %v686, %v881
          %v943 = vadd.f32 %v687, %v818
          %v944 = vadd.f32 %v688, %v882
          %v945 = vadd.f32 %v689, %v819
          %v946 = vadd.f32 %v690, %v883
          %v947 = vadd.f32 %v691, %v820
          %v948 = vadd.f32 %v692, %v884
          %949 = vst [vmem:[%s221] sm:$0xff] %v885
          %950 = vst [vmem:[%s221 + $0x8] sm:$0xff] %v886
          %951 = vst [vmem:[%s221 + $0x10] sm:$0xff] %v887
          %952 = vst [vmem:[%s221 + $0x18] sm:$0xff] %v888
          %953 = vst [vmem:[%s221 + $0x20] sm:$0xff] %v889
          %954 = vst [vmem:[%s221 + $0x28] sm:$0xff] %v890
          %955 = vst [vmem:[%s221 + $0x30] sm:$0xff] %v891
          %956 = vst [vmem:[%s221 + $0x38] sm:$0xff] %v892
          %957 = vst [vmem:[%s221 + $0x40] sm:$0xff] %v893
          %958 = vst [vmem:[%s221 + $0x48] sm:$0xff] %v894
          %959 = vst [vmem:[%s221 + $0x50] sm:$0xff] %v895
          %960 = vst [vmem:[%s221 + $0x58] sm:$0xff] %v896
          %961 = vst [vmem:[%s221 + $0x60] sm:$0xff] %v897
          %962 = vst [vmem:[%s221 + $0x68] sm:$0xff] %v898
          %963 = vst [vmem:[%s221 + $0x70] sm:$0xff] %v899
          %964 = vst [vmem:[%s221 + $0x78] sm:$0xff] %v900
          %965 = vst [vmem:[%s221 + $0x80] sm:$0xff] %v901
          %966 = vst [vmem:[%s221 + $0x88] sm:$0xff] %v902
          %967 = vst [vmem:[%s221 + $0x90] sm:$0xff] %v903
          %968 = vst [vmem:[%s221 + $0x98] sm:$0xff] %v904
          %969 = vst [vmem:[%s221 + $0xa0] sm:$0xff] %v905
          %970 = vst [vmem:[%s221 + $0xa8] sm:$0xff] %v906
          %971 = vst [vmem:[%s221 + $0xb0] sm:$0xff] %v907
          %972 = vst [vmem:[%s221 + $0xb8] sm:$0xff] %v908
          %973 = vst [vmem:[%s221 + $0xc0] sm:$0xff] %v909
          %974 = vst [vmem:[%s221 + $0xc8] sm:$0xff] %v910
          %975 = vst [vmem:[%s221 + $0xd0] sm:$0xff] %v911
          %976 = vst [vmem:[%s221 + $0xd8] sm:$0xff] %v912
          %977 = vst [vmem:[%s221 + $0xe0] sm:$0xff] %v913
          %978 = vst [vmem:[%s221 + $0xe8] sm:$0xff] %v914
          %979 = vst [vmem:[%s221 + $0xf0] sm:$0xff] %v915
          %980 = vst [vmem:[%s221 + $0xf8] sm:$0xff] %v916
          %981 = vst [vmem:[%s221 + $0x100] sm:$0xff] %v917
          %982 = vst [vmem:[%s221 + $0x108] sm:$0xff] %v918
          %983 = vst [vmem:[%s221 + $0x110] sm:$0xff] %v919
          %984 = vst [vmem:[%s221 + $0x118] sm:$0xff] %v920
          %985 = vst [vmem:[%s221 + $0x120] sm:$0xff] %v921
          %986 = vst [vmem:[%s221 + $0x128] sm:$0xff] %v922
          %987 = vst [vmem:[%s221 + $0x130] sm:$0xff] %v923
          %988 = vst [vmem:[%s221 + $0x138] sm:$0xff] %v924
          %989 = vst [vmem:[%s221 + $0x140] sm:$0xff] %v925
          %990 = vst [vmem:[%s221 + $0x148] sm:$0xff] %v926
          %991 = vst [vmem:[%s221 + $0x150] sm:$0xff] %v927
          %992 = vst [vmem:[%s221 + $0x158] sm:$0xff] %v928
          %993 = vst [vmem:[%s221 + $0x160] sm:$0xff] %v929
          %994 = vst [vmem:[%s221 + $0x168] sm:$0xff] %v930
          %995 = vst [vmem:[%s221 + $0x170] sm:$0xff] %v931
          %996 = vst [vmem:[%s221 + $0x178] sm:$0xff] %v932
          %997 = vst [vmem:[%s221 + $0x180] sm:$0xff] %v933
          %998 = vst [vmem:[%s221 + $0x188] sm:$0xff] %v934
          %999 = vst [vmem:[%s221 + $0x190] sm:$0xff] %v935
          %1000 = vst [vmem:[%s221 + $0x198] sm:$0xff] %v936
          %1001 = vst [vmem:[%s221 + $0x1a0] sm:$0xff] %v937
          %1002 = vst [vmem:[%s221 + $0x1a8] sm:$0xff] %v938
          %1003 = vst [vmem:[%s221 + $0x1b0] sm:$0xff] %v939
          %1004 = vst [vmem:[%s221 + $0x1b8] sm:$0xff] %v940
          %1005 = vst [vmem:[%s221 + $0x1c0] sm:$0xff] %v941
          %1006 = vst [vmem:[%s221 + $0x1c8] sm:$0xff] %v942
          %1007 = vst [vmem:[%s221 + $0x1d0] sm:$0xff] %v943
          %1008 = vst [vmem:[%s221 + $0x1d8] sm:$0xff] %v944
          %1009 = vst [vmem:[%s221 + $0x1e0] sm:$0xff] %v945
          %1010 = vst [vmem:[%s221 + $0x1e8] sm:$0xff] %v946
          %1011 = vst [vmem:[%s221 + $0x1f0] sm:$0xff] %v947
          %1012 = vst [vmem:[%s221 + $0x1f8] sm:$0xff] %v948
        $region44: #{tpu_custom_call.1} parent=27 // pred_fallthru
          _
        %s1013 = sand.u32 %s118, 1
        %s1014 = scalar_lea.sflag [#allocation7], %s1013
        %s1015 = sand.u32 %s118, 1
        %s1016 = smul.addr %s1015, 512
        %s1017 = scalar_lea.vmem [#allocation10], %s1016
        // Predicated region
        $region45: #{tpu_custom_call.1} parent=27 // pred_check
          %p1018 = pneg %p128
        $region46: #{tpu_custom_call.1} parent=27 // pred_check_branch
          %1020 = sbr.rel (%p1018) target = $region48
        $region47: #{tpu_custom_call.1} parent=27 // pred_region
          %p1021 = scmp.eq.s32.totalorder %s27, 0
          %s1022 = sld [smem:[#allocation3 + %s26]]
          %s1023 = sld [smem:[#allocation4 + %s26]]
          %s1024 = scalar_select %p1021, %s1022, %s1023
          %s1025 = scalar_select %p1021, %s1023, %s1022
          %s1026 = smul.u32 32, %s1024
          %s1027 = smul.u32 2, %s1025
          %1029 = vsyncadd %s1014, 0
          %s1030 = smul.addr %s1026, 2
          %s1031 = sadd.s32 %s1027, %s1030
          %s1032 = smul.addr %s1031, 8
          %s1033 = scalar_lea.hbm %s4, %s1032
          %s1034 = sshll.u32 %s1017, 4
          %s1035 = int_to_ptr.vmem [resolvable:$true] %s1034
          %s1036 = sshll.u32 %s1033, 4
          %s1037 = int_to_ptr.hbm [resolvable:$true] %s1036
          %1042 = dma.vmem_to_hbm [thread:$0]  %s1035, 8192, %s1037, %s1014, 256, 256, 16
        $region48: #{tpu_custom_call.1} parent=27 // pred_fallthru
          _
      $region28: #{tpu_custom_call.1} parent=5 // pred_fallthru
        _
      %p1043 = scmp.le.s32.totalorder 2, %s17
      // Predicated region
      $region49: #{tpu_custom_call.1} parent=5 // pred_check
        %p1044 = pneg %p1043
      $region50: #{tpu_custom_call.1} parent=5 // pred_check_branch
        %1046 = sbr.rel (%p1044) target = $region52
      $region51: #{tpu_custom_call.1} parent=5 // pred_region
        %s1047 = ssub.s32 %s17, 2
        // Predicated region
        $region53: #{tpu_custom_call.1} parent=51 // pred_check
          %p1048 = pneg %p134
        $region54: #{tpu_custom_call.1} parent=51 // pred_check_branch
          %1050 = sbr.rel (%p1048) target = $region56
        $region55: #{tpu_custom_call.1} parent=51 // pred_region
          %s1051 = sand.u32 %s119, 1
          %s1052 = scalar_lea.sflag [#allocation7], %s1051
          %s1053 = sand.u32 %s119, 1
          %s1054 = smul.addr %s1053, 512
          %s1055 = scalar_lea.vmem [#allocation10], %s1054
          %1057 = dma.done %s1052, 8192
        $region56: #{tpu_custom_call.1} parent=51 // pred_fallthru
          _
      $region52: #{tpu_custom_call.1} parent=5 // pred_fallthru
        _
    $region6: #{tpu_custom_call.1} parent=1 // loop_footer
      %s21 = sadd.s32 1, %s17
    $region7: #{tpu_custom_call.1} parent=1 // loop_footer_branch
      %16 = sbr.rel target = $region3
    $region8: #{tpu_custom_call.1} parent=1 // loop_exit
      _
    %1058 = vsyncpa [#allocation6], 1
    %s1059 = scalar_lea.sflag [#allocation6], 1
    %1060 = vsyncpa %s1059, 1
    %1061 = vsyncpa [#allocation9], 1
    %1062 = vsyncpa [#allocation7], 1
    %s1063 = scalar_lea.sflag [#allocation7], 1
    %1064 = vsyncpa %s1063, 1

</llo_original>
